<compile_context>
chip_gen: v7x
topology: tpu7x:2x2x1
jax: 0.10.0
libtpu: 0.0.40
codegen_flags: <defaults>
</compile_context>

<pallas_src>
import jax
import jax.numpy as jnp
from jax import lax
from jax.experimental import pallas as pl
from jax.experimental.pallas import tpu as pltpu

_INV_SQRT2 = 0.7071067811865476
_LN_EPS = 1e-5  # nn.LayerNorm default


def _projection_head_kernel(x_ref, w1_ref, b1_ref, w2_ref, b2_ref,
                            gamma_ref, beta_ref, o_ref):
    # projected = x @ W1 + b1   (MXU: bf16 in, f32 accumulate)
    projected = jnp.dot(x_ref[...], w1_ref[...],
                        preferred_element_type=jnp.float32) + b1_ref[...]

    # exact (erf-based) GELU, matching torch.nn.GELU() default
    g = 0.5 * projected * (1.0 + lax.erf(projected * _INV_SQRT2))

    # fc: gelu(projected) @ W2 + b2
    h = jnp.dot(g.astype(w2_ref.dtype), w2_ref[...],
                preferred_element_type=jnp.float32) + b2_ref[...]

    # dropout(p=0) == identity; residual add with pre-GELU `projected`
    y = h + projected

    # LayerNorm over the last dim (biased variance, eps=1e-5), affine
    mean = jnp.mean(y, axis=-1, keepdims=True)
    centered = y - mean
    var = jnp.mean(centered * centered, axis=-1, keepdims=True)
    y_norm = centered * lax.rsqrt(var + _LN_EPS)
    o_ref[...] = (y_norm * gamma_ref[...] + beta_ref[...]).astype(o_ref.dtype)


def projection_head(x, w1, b1, w2, b2, gamma, beta, *,
                    block_rows=256, matmul_dtype=jnp.bfloat16):
    """x: [B, E]; w1: [E, P]; w2: [P, P]; b1/b2/gamma/beta: [P]. Returns [B, P]."""
    B, E = x.shape
    e_w, P = w1.shape
    assert e_w == E and w2.shape == (P, P)
    # LayerNorm needs the whole row resident, so P stays untiled and lane-dense.
    assert P % 128 == 0, "projection_dim must be a multiple of 128"
    out_dtype = x.dtype

    # Zero-pad the contraction dim to a multiple of 128 (lane-dense x loads).
    e_pad = ((E + 127) // 128) * 128
    if e_pad != E:
        x = jnp.pad(x, ((0, 0), (0, e_pad - E)))
        w1 = jnp.pad(w1, ((0, e_pad - E), (0, 0)))

    # Row tile: multiple of 8, clamped to the (8-padded) batch; pad batch to a
    # whole number of tiles and slice the result back.
    br = max(8, min(int(block_rows), ((B + 7) // 8) * 8))
    b_pad = ((B + br - 1) // br) * br
    if b_pad != B:
        x = jnp.pad(x, ((0, b_pad - B), (0, 0)))

    # MXU operands in bf16 (f32 accumulation inside the kernel).
    xc = x.astype(matmul_dtype)
    w1c = w1.astype(matmul_dtype)
    w2c = w2.astype(matmul_dtype)
    b1r = b1.reshape(1, P).astype(jnp.float32)
    b2r = b2.reshape(1, P).astype(jnp.float32)
    gr = gamma.reshape(1, P).astype(jnp.float32)
    betar = beta.reshape(1, P).astype(jnp.float32)

    # Rough VMEM budget: double-buffered x/out tiles + resident weights +
    # f32 intermediates; clamp to 48 MiB (below v7x's 64 MiB physical).
    wbytes = jnp.dtype(matmul_dtype).itemsize
    vmem_est = (
        2 * br * e_pad * wbytes
        + 2 * br * P * jnp.dtype(out_dtype).itemsize
        + (e_pad * P + P * P) * wbytes
        + 4 * P * 4
        + 3 * br * P * 4
    )
    vmem_limit = int(min(max(2 * vmem_est, 16 * 2**20), 48 * 2**20))

    grid = (b_pad // br,)
    out = pl.pallas_call(
        _projection_head_kernel,
        out_shape=jax.ShapeDtypeStruct((b_pad, P), out_dtype),
        grid_spec=pl.GridSpec(
            grid=grid,
            in_specs=[
                pl.BlockSpec((br, e_pad), lambda i: (i, 0)),   # x tile
                pl.BlockSpec((e_pad, P), lambda i: (0, 0)),    # W1 (resident)
                pl.BlockSpec((1, P), lambda i: (0, 0)),        # b1
                pl.BlockSpec((P, P), lambda i: (0, 0)),        # W2 (resident)
                pl.BlockSpec((1, P), lambda i: (0, 0)),        # b2
                pl.BlockSpec((1, P), lambda i: (0, 0)),        # gamma
                pl.BlockSpec((1, P), lambda i: (0, 0)),        # beta
            ],
            out_specs=pl.BlockSpec((br, P), lambda i: (i, 0)),
        ),
        compiler_params=pltpu.CompilerParams(
            dimension_semantics=("parallel",),
            vmem_limit_bytes=vmem_limit),
    )(xc, w1c, b1r, w2c, b2r, gr, betar)
    return out[:B] if b_pad != B else out


def _reference(x, w1, b1, w2, b2, gamma, beta):
    projected = x @ w1 + b1
    h = jax.nn.gelu(projected, approximate=False)
    h = h @ w2 + b2
    y = h + projected
    mean = y.mean(-1, keepdims=True)
    var = ((y - mean) ** 2).mean(-1, keepdims=True)
    return (y - mean) / jnp.sqrt(var + _LN_EPS) * gamma + beta


if __name__ == "__main__":
    batch = 8
    embedding_dim = 32
    projection_dim = 128

    key = jax.random.PRNGKey(0)
    kx, k1, k2, k3, k4 = jax.random.split(key, 5)

    x = jax.random.normal(kx, (batch, embedding_dim), dtype=jnp.float32)
    # Linear stores [out, in]; kernel takes the transposed [in, out] layout.
    w1 = jax.random.normal(k1, (embedding_dim, projection_dim), jnp.float32) * 0.05
    b1 = jax.random.normal(k2, (projection_dim,), jnp.float32) * 0.01
    w2 = jax.random.normal(k3, (projection_dim, projection_dim), jnp.float32) * 0.05
    b2 = jax.random.normal(k4, (projection_dim,), jnp.float32) * 0.01
    gamma = jnp.ones((projection_dim,), jnp.float32)
    beta = jnp.zeros((projection_dim,), jnp.float32)

    ref = _reference(x, w1, b1, w2, b2, gamma, beta)

    # Exact-semantics path (f32 matmuls): tight tolerance vs reference.
    out_f32 = projection_head(x, w1, b1, w2, b2, gamma, beta,
                              matmul_dtype=jnp.float32)
    out_f32 = jax.block_until_ready(out_f32)
    assert out_f32.shape == (batch, projection_dim)
    assert jnp.allclose(out_f32, ref, atol=1e-4, rtol=1e-4), "f32 path mismatch"

    # Fast path (bf16 MXU operands, f32 accumulate): loose tolerance vs f32 ref.
    out_bf16 = projection_head(x, w1, b1, w2, b2, gamma, beta)
    out_bf16 = jax.block_until_ready(out_bf16)
    assert out_bf16.shape == (batch, projection_dim)
    assert jnp.allclose(out_bf16, ref, atol=2e-2, rtol=2e-2), "bf16 path mismatch"

    # Exercise multi-tile grid + row padding (grid=2 on the parallel axis).
    big_b = 272
    xb = jax.random.normal(kx, (big_b, embedding_dim), dtype=jnp.float32)
    out_big = projection_head(xb, w1, b1, w2, b2, gamma, beta)
    out_big = jax.block_until_ready(out_big)
    ref_big = _reference(xb, w1, b1, w2, b2, gamma, beta)
    assert out_big.shape == (big_b, projection_dim)
    assert jnp.allclose(out_big, ref_big, atol=2e-2, rtol=2e-2), "tiled path mismatch"

    print("KERNEL_OK")
</pallas_src>

<mosaic_0001>
module attributes {stable_mosaic.version = 11 : i64} {
  func.func @_projection_head_kernel(%arg0: i32, %arg1: memref<8x128xf32, #tpu.memory_space<vmem>>, %arg2: memref<128x128xf32, #tpu.memory_space<vmem>>, %arg3: memref<1x128xf32, #tpu.memory_space<vmem>>, %arg4: memref<128x128xf32, #tpu.memory_space<vmem>>, %arg5: memref<1x128xf32, #tpu.memory_space<vmem>>, %arg6: memref<1x128xf32, #tpu.memory_space<vmem>>, %arg7: memref<1x128xf32, #tpu.memory_space<vmem>>, %arg8: memref<8x128xf32, #tpu.memory_space<vmem>>) attributes {dimension_semantics = [#tpu.dimension_semantics<parallel>], iteration_bounds = array<i64: 1>, scalar_prefetch = 0 : i64, scratch_operands = 0 : i64, tpu.core_type = #tpu.core_type<tc>, window_params = [{transform_indices = @transform_0, window_bounds = array<i64: 8, 128>}, {pipeline_mode = #tpu.pipeline_mode<synchronous>, transform_indices = @transform_1, window_bounds = array<i64: 128, 128>}, {pipeline_mode = #tpu.pipeline_mode<synchronous>, transform_indices = @transform_2, window_bounds = array<i64: 1, 128>}, {pipeline_mode = #tpu.pipeline_mode<synchronous>, transform_indices = @transform_3, window_bounds = array<i64: 128, 128>}, {pipeline_mode = #tpu.pipeline_mode<synchronous>, transform_indices = @transform_4, window_bounds = array<i64: 1, 128>}, {pipeline_mode = #tpu.pipeline_mode<synchronous>, transform_indices = @transform_5, window_bounds = array<i64: 1, 128>}, {pipeline_mode = #tpu.pipeline_mode<synchronous>, transform_indices = @transform_6, window_bounds = array<i64: 1, 128>}, {transform_indices = @transform_7, window_bounds = array<i64: 8, 128>}]} {
    %c0 = arith.constant 0 : index
    %c0_0 = arith.constant 0 : index
    %0 = vector.load %arg1[%c0, %c0_0] : memref<8x128xf32, #tpu.memory_space<vmem>>, vector<8x128xf32>
    %c0_1 = arith.constant 0 : index
    %c0_2 = arith.constant 0 : index
    %1 = vector.load %arg2[%c0_1, %c0_2] : memref<128x128xf32, #tpu.memory_space<vmem>>, vector<128x128xf32>
    %cst = arith.constant dense<0.000000e+00> : vector<8x128xf32>
    %2 = tpu.matmul %0, %1, %cst {dimension_numbers = #tpu.dot_dimension_numbers<[1], [0], [0], [1], [0, 0, 1, 1], [], []>} : vector<8x128xf32>, vector<128x128xf32>, vector<8x128xf32> -> vector<8x128xf32>
    %c0_3 = arith.constant 0 : index
    %c0_4 = arith.constant 0 : index
    %3 = vector.load %arg3[%c0_3, %c0_4] : memref<1x128xf32, #tpu.memory_space<vmem>>, vector<1x128xf32>
    %4 = vector.broadcast %3 : vector<1x128xf32> to vector<8x128xf32>
    %5 = arith.addf %2, %4 : vector<8x128xf32>
    %cst_5 = arith.constant 5.000000e-01 : f32
    %6 = vector.broadcast %cst_5 : f32 to vector<8x128xf32>
    %7 = arith.mulf %6, %5 : vector<8x128xf32>
    %cst_6 = arith.constant 0.707106769 : f32
    %8 = vector.broadcast %cst_6 : f32 to vector<8x128xf32>
    %9 = arith.mulf %5, %8 : vector<8x128xf32>
    %10 = math.erf %9 : vector<8x128xf32>
    %cst_7 = arith.constant 1.000000e+00 : f32
    %11 = vector.broadcast %cst_7 : f32 to vector<8x128xf32>
    %12 = arith.addf %11, %10 : vector<8x128xf32>
    %13 = arith.mulf %7, %12 : vector<8x128xf32>
    %c0_8 = arith.constant 0 : index
    %c0_9 = arith.constant 0 : index
    %14 = vector.load %arg4[%c0_8, %c0_9] : memref<128x128xf32, #tpu.memory_space<vmem>>, vector<128x128xf32>
    %cst_10 = arith.constant dense<0.000000e+00> : vector<8x128xf32>
    %15 = tpu.matmul %13, %14, %cst_10 {dimension_numbers = #tpu.dot_dimension_numbers<[1], [0], [0], [1], [0, 0, 1, 1], [], []>} : vector<8x128xf32>, vector<128x128xf32>, vector<8x128xf32> -> vector<8x128xf32>
    %c0_11 = arith.constant 0 : index
    %c0_12 = arith.constant 0 : index
    %16 = vector.load %arg5[%c0_11, %c0_12] : memref<1x128xf32, #tpu.memory_space<vmem>>, vector<1x128xf32>
    %17 = vector.broadcast %16 : vector<1x128xf32> to vector<8x128xf32>
    %18 = arith.addf %15, %17 : vector<8x128xf32>
    %19 = arith.addf %18, %5 : vector<8x128xf32>
    %cst_13 = arith.constant dense<0.000000e+00> : vector<8xf32>
    %20 = vector.multi_reduction <add>, %19, %cst_13 [1] : vector<8x128xf32> to vector<8xf32>
    %21 = vector.shape_cast %20 : vector<8xf32> to vector<8x1xf32>
    %cst_14 = arith.constant 1.280000e+02 : f32
    %22 = vector.broadcast %cst_14 : f32 to vector<8x1xf32>
    %23 = arith.divf %21, %22 : vector<8x1xf32>
    %24 = vector.broadcast %23 : vector<8x1xf32> to vector<8x128xf32>
    %25 = arith.subf %19, %24 : vector<8x128xf32>
    %26 = arith.mulf %25, %25 : vector<8x128xf32>
    %cst_15 = arith.constant dense<0.000000e+00> : vector<8xf32>
    %27 = vector.multi_reduction <add>, %26, %cst_15 [1] : vector<8x128xf32> to vector<8xf32>
    %28 = vector.shape_cast %27 : vector<8xf32> to vector<8x1xf32>
    %cst_16 = arith.constant 1.280000e+02 : f32
    %29 = vector.broadcast %cst_16 : f32 to vector<8x1xf32>
    %30 = arith.divf %28, %29 : vector<8x1xf32>
    %cst_17 = arith.constant 9.99999974E-6 : f32
    %31 = vector.broadcast %cst_17 : f32 to vector<8x1xf32>
    %32 = arith.addf %30, %31 : vector<8x1xf32>
    %33 = math.rsqrt %32 : vector<8x1xf32>
    %34 = vector.broadcast %33 : vector<8x1xf32> to vector<8x128xf32>
    %35 = arith.mulf %25, %34 : vector<8x128xf32>
    %c0_18 = arith.constant 0 : index
    %c0_19 = arith.constant 0 : index
    %36 = vector.load %arg6[%c0_18, %c0_19] : memref<1x128xf32, #tpu.memory_space<vmem>>, vector<1x128xf32>
    %37 = vector.broadcast %36 : vector<1x128xf32> to vector<8x128xf32>
    %38 = arith.mulf %35, %37 : vector<8x128xf32>
    %c0_20 = arith.constant 0 : index
    %c0_21 = arith.constant 0 : index
    %39 = vector.load %arg7[%c0_20, %c0_21] : memref<1x128xf32, #tpu.memory_space<vmem>>, vector<1x128xf32>
    %40 = vector.broadcast %39 : vector<1x128xf32> to vector<8x128xf32>
    %41 = arith.addf %38, %40 : vector<8x128xf32>
    %c0_22 = arith.constant 0 : index
    %c0_23 = arith.constant 0 : index
    %42 = vector.load %arg8[%c0_22, %c0_23] : memref<8x128xf32, #tpu.memory_space<vmem>>, vector<8x128xf32>
    tpu.vector_store %arg8[%c0_22, %c0_23], %41 {strides = array<i32>} : memref<8x128xf32, #tpu.memory_space<vmem>>, vector<8x128xf32>,
    return
  }
  func.func @transform_0(%arg0: i32) -> (i32, i32) {
    %c0_i32 = arith.constant 0 : i32
    %c0_i32_0 = arith.constant 0 : i32
    return %arg0, %c0_i32 : i32, i32
  }
  func.func @transform_1(%arg0: i32) -> (i32, i32) {
    %c0_i32 = arith.constant 0 : i32
    %c0_i32_0 = arith.constant 0 : i32
    %c0_i32_1 = arith.constant 0 : i32
    return %c0_i32, %c0_i32_0 : i32, i32
  }
  func.func @transform_2(%arg0: i32) -> (i32, i32) {
    %c0_i32 = arith.constant 0 : i32
    %c0_i32_0 = arith.constant 0 : i32
    %c0_i32_1 = arith.constant 0 : i32
    return %c0_i32, %c0_i32_0 : i32, i32
  }
  func.func @transform_3(%arg0: i32) -> (i32, i32) {
    %c0_i32 = arith.constant 0 : i32
    %c0_i32_0 = arith.constant 0 : i32
    %c0_i32_1 = arith.constant 0 : i32
    return %c0_i32, %c0_i32_0 : i32, i32
  }
  func.func @transform_4(%arg0: i32) -> (i32, i32) {
    %c0_i32 = arith.constant 0 : i32
    %c0_i32_0 = arith.constant 0 : i32
    %c0_i32_1 = arith.constant 0 : i32
    return %c0_i32, %c0_i32_0 : i32, i32
  }
  func.func @transform_5(%arg0: i32) -> (i32, i32) {
    %c0_i32 = arith.constant 0 : i32
    %c0_i32_0 = arith.constant 0 : i32
    %c0_i32_1 = arith.constant 0 : i32
    return %c0_i32, %c0_i32_0 : i32, i32
  }
  func.func @transform_6(%arg0: i32) -> (i32, i32) {
    %c0_i32 = arith.constant 0 : i32
    %c0_i32_0 = arith.constant 0 : i32
    %c0_i32_1 = arith.constant 0 : i32
    return %c0_i32, %c0_i32_0 : i32, i32
  }
  func.func @transform_7(%arg0: i32) -> (i32, i32) {
    %c0_i32 = arith.constant 0 : i32
    %c0_i32_0 = arith.constant 0 : i32
    return %arg0, %c0_i32 : i32, i32
  }
}

</mosaic_0001>

<llo_original>
// kernel: tpu_custom_call.1
$region0: #{tpu_custom_call.1}
  #allocation0 [shape = 'u32[]', space=smem, size = 0x4, offset = 0x4, fixed_abs, tag = 'smem constant byte address 0x4 - core index']
  #allocation1 [shape = 'u32[144,128]{1,0:T(1,128)}', space=vmem, size = 0x12000, scoped, tag = 'internal scratch']
  %s0 = inlined_call_operand.hbm [shape: f32[8,128], index: 0, kind: input, shape index: {}]
  %s1 = inlined_call_operand.hbm [shape: f32[128,128], index: 1, kind: input, shape index: {}]
  %s2 = inlined_call_operand.vmem [shape: f32[1,128], index: 2, kind: input, shape index: {}]
  %s3 = inlined_call_operand.hbm [shape: f32[128,128], index: 3, kind: input, shape index: {}]
  %s4 = inlined_call_operand.vmem [shape: f32[1,128], index: 4, kind: input, shape index: {}]
  %s5 = inlined_call_operand.vmem [shape: f32[1,128], index: 5, kind: input, shape index: {}]
  %s6 = inlined_call_operand.vmem [shape: f32[1,128], index: 6, kind: input, shape index: {}]
  %s7 = inlined_call_operand.hbm [shape: f32[8,128], index: 7, kind: output, shape index: {}]
  %s8 = sld [smem:[#allocation0]]
  $region50: #{tpu_custom_call.1} parent=0
    _
  %s10 = ssub.s32 1, %s8
  %s11 = scalar_select 0, %s10, %s8
  $region1: #{tpu_custom_call.1} parent=0
    #allocation2 [shape = 'u8[4096]{0}', space=vmem, size = 0x1000, scoped, tag = 'input window, operand 0, single buffered']
    #allocation3 [shape = 's32[1]{0}', space=sflag, size = 0x4, scoped, tag = 'scoped memory for tpu_custom_call.1']
    #allocation4 [shape = 's32[1]{0}', space=sflag, size = 0x4, scoped, tag = 'scoped memory for tpu_custom_call.1']
    #allocation5 [shape = 'u8[65536]{0}', space=vmem, size = 0x10000, scoped, tag = 'input window, operand 1, single buffered']
    #allocation6 [shape = 's32[1]{0}', space=sflag, size = 0x4, scoped, tag = 'scoped memory for tpu_custom_call.1']
    #allocation7 [shape = 'u8[65536]{0}', space=vmem, size = 0x10000, scoped, tag = 'input window, operand 3, single buffered']
    #allocation8 [shape = 'u8[4096]{0}', space=vmem, size = 0x1000, scoped, tag = 'output window, operand 0, single buffered']
    %12 = vsyncpa [#allocation3], 0
    %13 = vsyncpa [#allocation6], 0
    %14 = vsyncpa [#allocation4], 0
    // Predicated region
    $region2: #{tpu_custom_call.1} parent=1 // pred_check
      _
    $region3: #{tpu_custom_call.1} parent=1 // pred_check_branch
      %16 = sbr.rel (0) target = $region5
    $region4: #{tpu_custom_call.1} parent=1 // pred_region
      %s18 = ssub.s32 128, 128
      %19 = vsyncadd [#allocation3], %s18
      %s21 = sshll.u32 [#allocation2], 4
      %s22 = int_to_ptr.vmem [resolvable:$true] %s21
      %24 = dma.hbm_to_vmem [thread:$0]  %s0, 128, %s22, [#allocation3]
    $region5: #{tpu_custom_call.1} parent=1 // pred_fallthru
      _
    // Predicated region
    $region6: #{tpu_custom_call.1} parent=1 // pred_check
      _
    $region7: #{tpu_custom_call.1} parent=1 // pred_check_branch
      %26 = sbr.rel (0) target = $region9
    $region8: #{tpu_custom_call.1} parent=1 // pred_region
      %s28 = ssub.s32 2048, 2048
      %29 = vsyncadd [#allocation6], %s28
      %s30 = sshll.u32 [#allocation5], 4
      %s31 = int_to_ptr.vmem [resolvable:$true] %s30
      %36 = dma.hbm_to_vmem [thread:$0]  %s1, 2048, %s31, [#allocation6], 128, 128, 8
    $region9: #{tpu_custom_call.1} parent=1 // pred_fallthru
      _
    // Predicated region
    $region10: #{tpu_custom_call.1} parent=1 // pred_check
      _
    $region11: #{tpu_custom_call.1} parent=1 // pred_check_branch
      %38 = sbr.rel (0) target = $region13
    $region12: #{tpu_custom_call.1} parent=1 // pred_region
      _
    $region13: #{tpu_custom_call.1} parent=1 // pred_fallthru
      _
    // Predicated region
    $region14: #{tpu_custom_call.1} parent=1 // pred_check
      _
    $region15: #{tpu_custom_call.1} parent=1 // pred_check_branch
      %40 = sbr.rel (0) target = $region17
    $region16: #{tpu_custom_call.1} parent=1 // pred_region
      %s42 = ssub.s32 2048, 2048
      %43 = vsyncadd [#allocation6], %s42
      %s44 = sshll.u32 [#allocation7], 4
      %s45 = int_to_ptr.vmem [resolvable:$true] %s44
      %50 = dma.hbm_to_vmem [thread:$0]  %s3, 2048, %s45, [#allocation6], 128, 128, 8
    $region17: #{tpu_custom_call.1} parent=1 // pred_fallthru
      _
    // Predicated region
    $region18: #{tpu_custom_call.1} parent=1 // pred_check
      _
    $region19: #{tpu_custom_call.1} parent=1 // pred_check_branch
      %52 = sbr.rel (0) target = $region21
    $region20: #{tpu_custom_call.1} parent=1 // pred_region
      _
    $region21: #{tpu_custom_call.1} parent=1 // pred_fallthru
      _
    // Predicated region
    $region22: #{tpu_custom_call.1} parent=1 // pred_check
      _
    $region23: #{tpu_custom_call.1} parent=1 // pred_check_branch
      %54 = sbr.rel (0) target = $region25
    $region24: #{tpu_custom_call.1} parent=1 // pred_region
      _
    $region25: #{tpu_custom_call.1} parent=1 // pred_fallthru
      _
    // Predicated region
    $region26: #{tpu_custom_call.1} parent=1 // pred_check
      _
    $region27: #{tpu_custom_call.1} parent=1 // pred_check_branch
      %56 = sbr.rel (0) target = $region29
    $region28: #{tpu_custom_call.1} parent=1 // pred_region
      _
    $region29: #{tpu_custom_call.1} parent=1 // pred_fallthru
      _
    // Predicated region
    $region30: #{tpu_custom_call.1} parent=1 // pred_check
      _
    $region31: #{tpu_custom_call.1} parent=1 // pred_check_branch
      %58 = sbr.rel (0) target = $region33
    $region32: #{tpu_custom_call.1} parent=1 // pred_region
      %59 = dma.done [#allocation3], 128
    $region33: #{tpu_custom_call.1} parent=1 // pred_fallthru
      _
    // Predicated region
    $region34: #{tpu_custom_call.1} parent=1 // pred_check
      _
    $region35: #{tpu_custom_call.1} parent=1 // pred_check_branch
      %61 = sbr.rel (0) target = $region37
    $region36: #{tpu_custom_call.1} parent=1 // pred_region
      %62 = dma.done [#allocation6], 2048
    $region37: #{tpu_custom_call.1} parent=1 // pred_fallthru
      _
    // Predicated region
    $region38: #{tpu_custom_call.1} parent=1 // pred_check
      _
    $region39: #{tpu_custom_call.1} parent=1 // pred_check_branch
      %64 = sbr.rel (0) target = $region41
    $region40: #{tpu_custom_call.1} parent=1 // pred_region
      %65 = dma.done [#allocation6], 2048
    $region41: #{tpu_custom_call.1} parent=1 // pred_fallthru
      _
    %v66 = vld [vmem:[#allocation2] sm:$0xff]
    %v67 = vld [vmem:[#allocation5] sm:$0xff]
    %v68 = vld [vmem:[#allocation5 + $0x8] sm:$0xff]
    %v69 = vld [vmem:[#allocation5 + $0x10] sm:$0xff]
    %v70 = vld [vmem:[#allocation5 + $0x18] sm:$0xff]
    %v71 = vld [vmem:[#allocation5 + $0x20] sm:$0xff]
    %v72 = vld [vmem:[#allocation5 + $0x28] sm:$0xff]
    %v73 = vld [vmem:[#allocation5 + $0x30] sm:$0xff]
    %v74 = vld [vmem:[#allocation5 + $0x38] sm:$0xff]
    %v75 = vld [vmem:[#allocation5 + $0x40] sm:$0xff]
    %v76 = vld [vmem:[#allocation5 + $0x48] sm:$0xff]
    %v77 = vld [vmem:[#allocation5 + $0x50] sm:$0xff]
    %v78 = vld [vmem:[#allocation5 + $0x58] sm:$0xff]
    %v79 = vld [vmem:[#allocation5 + $0x60] sm:$0xff]
    %v80 = vld [vmem:[#allocation5 + $0x68] sm:$0xff]
    %v81 = vld [vmem:[#allocation5 + $0x70] sm:$0xff]
    %v82 = vld [vmem:[#allocation5 + $0x78] sm:$0xff]
    %v83 = vld [vmem:[%s2] sm:$0x1]
    %v85 = vlaneseq
    %v86 = vshrl.u32 %v85, 7
    %v87 = vsub.s32 0, %v86
    %v88 = vrot.slane %v83, %v87
    %90 = vmatprep.subr.mxu0 0.0
    %91 = vmatpush1.msra.mxu0 %v67
    %92 = vmatprep.subr.mxu0 0.0
    %93 = vmatpush1.msra.mxu0 %v68
    %94 = vmatprep.subr.mxu0 0.0
    %95 = vmatpush1.msra.mxu0 %v69
    %96 = vmatprep.subr.mxu0 0.0
    %97 = vmatpush1.msra.mxu0 %v70
    %98 = vmatprep.subr.mxu0 0.0
    %99 = vmatpush1.msra.mxu0 %v71
    %100 = vmatprep.subr.mxu0 0.0
    %101 = vmatpush1.msra.mxu0 %v72
    %102 = vmatprep.subr.mxu0 0.0
    %103 = vmatpush1.msra.mxu0 %v73
    %104 = vmatprep.subr.mxu0 0.0
    %105 = vmatpush1.msra.mxu0 %v74
    %106 = vmatprep.subr.mxu0 0.0
    %107 = vmatpush1.msra.mxu0 %v75
    %108 = vmatprep.subr.mxu0 0.0
    %109 = vmatpush1.msra.mxu0 %v76
    %110 = vmatprep.subr.mxu0 0.0
    %111 = vmatpush1.msra.mxu0 %v77
    %112 = vmatprep.subr.mxu0 0.0
    %113 = vmatpush1.msra.mxu0 %v78
    %114 = vmatprep.subr.mxu0 0.0
    %115 = vmatpush1.msra.mxu0 %v79
    %116 = vmatprep.subr.mxu0 0.0
    %117 = vmatpush1.msra.mxu0 %v80
    %118 = vmatprep.subr.mxu0 0.0
    %119 = vmatpush1.msra.mxu0 %v81
    %120 = vmatprep.subr.mxu0 0.0
    %121 = vmatpush1.msra.mxu0 %v82
    %122 = vmatprep.subr.mxu0 0.0
    %123 = vmatpush1.msra.mxu0 0.0
    %124 = vmatprep.subr.mxu0 0.0
    %125 = vmatpush1.msra.mxu0 0.0
    %126 = vmatprep.subr.mxu0 0.0
    %127 = vmatpush1.msra.mxu0 0.0
    %128 = vmatprep.subr.mxu0 0.0
    %129 = vmatpush1.msra.mxu0 0.0
    %130 = vmatprep.subr.mxu0 0.0
    %131 = vmatpush1.msra.mxu0 0.0
    %132 = vmatprep.subr.mxu0 0.0
    %133 = vmatpush1.msra.mxu0 0.0
    %134 = vmatprep.subr.mxu0 0.0
    %135 = vmatpush1.msra.mxu0 0.0
    %136 = vmatprep.subr.mxu0 0.0
    %137 = vmatpush1.msra.mxu0 0.0
    %138 = vmatprep.subr.mxu0 0.0
    %139 = vmatpush1.msra.mxu0 0.0
    %140 = vmatprep.subr.mxu0 0.0
    %141 = vmatpush1.msra.mxu0 0.0
    %142 = vmatprep.subr.mxu0 0.0
    %143 = vmatpush1.msra.mxu0 0.0
    %144 = vmatprep.subr.mxu0 0.0
    %145 = vmatpush1.msra.mxu0 0.0
    %146 = vmatprep.subr.mxu0 0.0
    %147 = vmatpush1.msra.mxu0 0.0
    %148 = vmatprep.subr.mxu0 0.0
    %149 = vmatpush1.msra.mxu0 0.0
    %150 = vmatprep.subr.mxu0 0.0
    %151 = vmatpush1.msra.mxu0 0.0
    %152 = vmatprep.subr.mxu0 0.0
    %153 = vmatpush1.msra.mxu0 0.0
    %154 = vmatprep.mubr.f32.mxu0 0.0
    %155 = vmatmul.mubr.f32.gmra.mrb[0].mxu0 %v66
    %v156 = vpop.f32.mrb[0].mxu0
    %v157 = vadd.f32 %v88, %v156
    %v158 = vpop.f32.mrb[0].mxu0
    %159 = vdwg.mxu0
    %v160 = vmul.f32 %v157, 0.5
    %v161 = vmul.f32 %v157, 0.70710677
    %v162 = verf.f32.pop %v161
    %v163 = vadd.f32 %v162, 1.0
    %v164 = vmul.f32 %v160, %v163
    %v165 = vld [vmem:[#allocation7] sm:$0xff]
    %v166 = vld [vmem:[#allocation7 + $0x8] sm:$0xff]
    %v167 = vld [vmem:[#allocation7 + $0x10] sm:$0xff]
    %v168 = vld [vmem:[#allocation7 + $0x18] sm:$0xff]
    %v169 = vld [vmem:[#allocation7 + $0x20] sm:$0xff]
    %v170 = vld [vmem:[#allocation7 + $0x28] sm:$0xff]
    %v171 = vld [vmem:[#allocation7 + $0x30] sm:$0xff]
    %v172 = vld [vmem:[#allocation7 + $0x38] sm:$0xff]
    %v173 = vld [vmem:[#allocation7 + $0x40] sm:$0xff]
    %v174 = vld [vmem:[#allocation7 + $0x48] sm:$0xff]
    %v175 = vld [vmem:[#allocation7 + $0x50] sm:$0xff]
    %v176 = vld [vmem:[#allocation7 + $0x58] sm:$0xff]
    %v177 = vld [vmem:[#allocation7 + $0x60] sm:$0xff]
    %v178 = vld [vmem:[#allocation7 + $0x68] sm:$0xff]
    %v179 = vld [vmem:[#allocation7 + $0x70] sm:$0xff]
    %v180 = vld [vmem:[#allocation7 + $0x78] sm:$0xff]
    %v181 = vld [vmem:[%s4] sm:$0x1]
    %v183 = vlaneseq
    %v184 = vshrl.u32 %v183, 7
    %v185 = vsub.s32 0, %v184
    %v186 = vrot.slane %v181, %v185
    %188 = vmatprep.subr.mxu0 0.0
    %189 = vmatpush1.msra.mxu0 %v165
    %190 = vmatprep.subr.mxu0 0.0
    %191 = vmatpush1.msra.mxu0 %v166
    %192 = vmatprep.subr.mxu0 0.0
    %193 = vmatpush1.msra.mxu0 %v167
    %194 = vmatprep.subr.mxu0 0.0
    %195 = vmatpush1.msra.mxu0 %v168
    %196 = vmatprep.subr.mxu0 0.0
    %197 = vmatpush1.msra.mxu0 %v169
    %198 = vmatprep.subr.mxu0 0.0
    %199 = vmatpush1.msra.mxu0 %v170
    %200 = vmatprep.subr.mxu0 0.0
    %201 = vmatpush1.msra.mxu0 %v171
    %202 = vmatprep.subr.mxu0 0.0
    %203 = vmatpush1.msra.mxu0 %v172
    %204 = vmatprep.subr.mxu0 0.0
    %205 = vmatpush1.msra.mxu0 %v173
    %206 = vmatprep.subr.mxu0 0.0
    %207 = vmatpush1.msra.mxu0 %v174
    %208 = vmatprep.subr.mxu0 0.0
    %209 = vmatpush1.msra.mxu0 %v175
    %210 = vmatprep.subr.mxu0 0.0
    %211 = vmatpush1.msra.mxu0 %v176
    %212 = vmatprep.subr.mxu0 0.0
    %213 = vmatpush1.msra.mxu0 %v177
    %214 = vmatprep.subr.mxu0 0.0
    %215 = vmatpush1.msra.mxu0 %v178
    %216 = vmatprep.subr.mxu0 0.0
    %217 = vmatpush1.msra.mxu0 %v179
    %218 = vmatprep.subr.mxu0 0.0
    %219 = vmatpush1.msra.mxu0 %v180
    %220 = vmatprep.subr.mxu0 0.0
    %221 = vmatpush1.msra.mxu0 0.0
    %222 = vmatprep.subr.mxu0 0.0
    %223 = vmatpush1.msra.mxu0 0.0
    %224 = vmatprep.subr.mxu0 0.0
    %225 = vmatpush1.msra.mxu0 0.0
    %226 = vmatprep.subr.mxu0 0.0
    %227 = vmatpush1.msra.mxu0 0.0
    %228 = vmatprep.subr.mxu0 0.0
    %229 = vmatpush1.msra.mxu0 0.0
    %230 = vmatprep.subr.mxu0 0.0
    %231 = vmatpush1.msra.mxu0 0.0
    %232 = vmatprep.subr.mxu0 0.0
    %233 = vmatpush1.msra.mxu0 0.0
    %234 = vmatprep.subr.mxu0 0.0
    %235 = vmatpush1.msra.mxu0 0.0
    %236 = vmatprep.subr.mxu0 0.0
    %237 = vmatpush1.msra.mxu0 0.0
    %238 = vmatprep.subr.mxu0 0.0
    %239 = vmatpush1.msra.mxu0 0.0
    %240 = vmatprep.subr.mxu0 0.0
    %241 = vmatpush1.msra.mxu0 0.0
    %242 = vmatprep.subr.mxu0 0.0
    %243 = vmatpush1.msra.mxu0 0.0
    %244 = vmatprep.subr.mxu0 0.0
    %245 = vmatpush1.msra.mxu0 0.0
    %246 = vmatprep.subr.mxu0 0.0
    %247 = vmatpush1.msra.mxu0 0.0
    %248 = vmatprep.subr.mxu0 0.0
    %249 = vmatpush1.msra.mxu0 0.0
    %250 = vmatprep.subr.mxu0 0.0
    %251 = vmatpush1.msra.mxu0 0.0
    %252 = vmatprep.mubr.f32.mxu0 0.0
    %253 = vmatmul.mubr.f32.gmra.mrb[0].mxu0 %v164
    %v254 = vpop.f32.mrb[0].mxu0
    %v255 = vadd.f32 %v186, %v254
    %v256 = vpop.f32.mrb[0].mxu0
    %257 = vdwg.mxu0
    %v258 = vadd.f32 %v255, %v157
    %259 = vadd.xlane.f32.xlu0 %v258
    %v260 = vpop.xlane.xlu0 %259
    %v261 = vrcp.pop 128.0
    %v262 = vmul.f32 %v260, %v261
    %v263 = vsub.f32 %v258, %v262
    %v264 = vmul.f32 %v263, %v263
    %265 = vadd.xlane.f32.xlu0 %v264
    %v266 = vpop.xlane.xlu0 %265
    %v267 = vmul.f32 %v266, %v261
    %v268 = vadd.f32 %v267, 1e-05
    %v269 = vrsqrt.pop %v268
    %v270 = vmul.f32 %v263, %v269
    %v271 = vld [vmem:[%s5] sm:$0x1]
    %v273 = vlaneseq
    %v274 = vshrl.u32 %v273, 7
    %v275 = vsub.s32 0, %v274
    %v276 = vrot.slane %v271, %v275
    %v278 = vmul.f32 %v270, %v276
    %v279 = vld [vmem:[%s6] sm:$0x1]
    %v281 = vlaneseq
    %v282 = vshrl.u32 %v281, 7
    %v283 = vsub.s32 0, %v282
    %v284 = vrot.slane %v279, %v283
    %v286 = vadd.f32 %v278, %v284
    %287 = vst [vmem:[#allocation8] sm:$0xff] %v286
    // Predicated region
    $region42: #{tpu_custom_call.1} parent=1 // pred_check
      _
    $region43: #{tpu_custom_call.1} parent=1 // pred_check_branch
      %289 = sbr.rel (0) target = $region45
    $region44: #{tpu_custom_call.1} parent=1 // pred_region
      %s291 = ssub.s32 128, 128
      %292 = vsyncadd [#allocation4], %s291
      %s294 = sshll.u32 [#allocation8], 4
      %s295 = int_to_ptr.vmem [resolvable:$true] %s294
      %297 = dma.vmem_to_hbm [thread:$0]  %s295, 128, %s7, [#allocation4]
    $region45: #{tpu_custom_call.1} parent=1 // pred_fallthru
      _
    // Predicated region
    $region46: #{tpu_custom_call.1} parent=1 // pred_check
      _
    $region47: #{tpu_custom_call.1} parent=1 // pred_check_branch
      %299 = sbr.rel (0) target = $region49
    $region48: #{tpu_custom_call.1} parent=1 // pred_region
      %300 = dma.done [#allocation4], 128
    $region49: #{tpu_custom_call.1} parent=1 // pred_fallthru
      _
    %301 = vsyncpa [#allocation3], 1
    %302 = vsyncpa [#allocation6], 1
    %303 = vsyncpa [#allocation4], 1

</llo_original>
